<compile_context>
chip_gen: v7x
topology: tpu7x:2x2x1
jax: 0.10.0
libtpu: 0.0.40
codegen_flags: <defaults>
</compile_context>

<pallas_src>
import functools
import math

import jax
import jax.numpy as jnp
from jax.experimental import pallas as pl
from jax.experimental.pallas import tpu as pltpu


_LANE = 128
_VMEM_LIMIT_BYTES = 48 * 1024 * 1024   # fits v5e/v6e (128 MiB physical) and v7x (64 MiB/TC)
_SMALL_BYTES = 512 * 1024               # below this, a single block is fine
_MIN_GRID = 8                           # >= 4 blocks per TensorCore on v7x megacore


def _vmem_budget():
    """(vmem_limit_bytes, target_block_bytes), conservatively capped by hardware."""
    limit = _VMEM_LIMIT_BYTES
    try:
        cap = int(pltpu.get_tpu_info().vmem_capacity_bytes)
        limit = min(limit, (cap * 3) // 4)
    except Exception:  # hardware query unavailable: fall back to the static limit
        pass
    # 1 input + 1 output, double-buffered => 4x block bytes live; keep ~1/3 headroom.
    target_block = max(512 * 1024, limit // 6)
    return limit, target_block


def _relux_kernel(x_ref, o_ref, *, max_value):
    # clamp(x, 0, max_value) == relu6(x * scale) / scale with scale = 6/max_value,
    # computed in the native dtype (weak-typed scalars: no promotion, no upcast).
    x = x_ref[...]
    o_ref[...] = jnp.minimum(jnp.maximum(x, 0), max_value).astype(o_ref.dtype)


def relux(x, max_value: float = 1.0, *, donate: bool = False):
    """ReLUX == clamp(x, 0, max_value), elementwise, any shape (float dtypes).

    donate=True aliases the output onto the input buffer (input_output_aliases);
    only pass it when the caller actually donates x.
    """
    orig_shape = x.shape
    dtype = x.dtype
    total = math.prod(orig_shape) if orig_shape else 1
    if total == 0:
        return x

    # ---- lane-dense flat 2-D view (reshape only: no copy) --------------------
    cols = None
    for c in (4096, 2048, 1024, 512, 256, 128):
        if total % c == 0:
            cols = c
            break
    if cols is None:
        # Rare: element count not a multiple of 128.  The previous pad+slice
        # path added a full extra HBM read+write; a single fused XLA clamp is
        # the bandwidth-optimal fallback for such shapes.
        return jnp.clip(x, 0.0, max_value).astype(dtype)

    rows = total // cols
    x2 = x.reshape(rows, cols)

    # ---- block sizing ---------------------------------------------------------
    vmem_limit, target_block = _vmem_budget()
    itemsize = jnp.dtype(dtype).itemsize
    row_bytes = cols * itemsize
    total_bytes = rows * row_bytes

    if total_bytes <= _SMALL_BYTES or rows <= 32:
        tr = rows                                    # single block (full-dim: legal)
    else:
        # big blocks to amortize per-step overhead...
        tr = max(32, (target_block // row_bytes) // 32 * 32)
        # ...but keep >= _MIN_GRID blocks so both v7x cores get work and the
        # DMA pipeline has something to overlap with.
        tr_cap = max(32, (rows // _MIN_GRID) // 32 * 32)
        tr = min(tr, tr_cap, rows)

    grid = (pl.cdiv(rows, tr),)   # last block may be partial; Pallas masks it

    kernel = functools.partial(_relux_kernel, max_value=float(max_value))

    out = pl.pallas_call(
        kernel,
        out_shape=jax.ShapeDtypeStruct((rows, cols), dtype),
        grid_spec=pltpu.PrefetchScalarGridSpec(
            num_scalar_prefetch=0,
            grid=grid,
            in_specs=[pl.BlockSpec((tr, cols), lambda i: (i, 0))],
            out_specs=pl.BlockSpec((tr, cols), lambda i: (i, 0)),
        ),
        compiler_params=pltpu.CompilerParams(
            dimension_semantics=("parallel",),   # shard grid across TCs (v7x megacore)
            vmem_limit_bytes=vmem_limit,
        ),
        cost_estimate=pl.CostEstimate(
            flops=2 * total,
            transcendentals=0,
            bytes_accessed=2 * total * itemsize,
        ),
        input_output_aliases=({0: 0} if donate else {}),
    )(x2)

    return out.reshape(orig_shape)


if __name__ == "__main__":
    key = jax.random.PRNGKey(0)
    # NCHW-ish conv activation: batch=2, channels=4, 16x16 spatial
    x = jax.random.normal(key, (2, 4, 16, 16), dtype=jnp.float32) * 2.0

    max_value = 1.0
    y = jax.block_until_ready(relux(x, max_value=max_value))

    # Reference check in plain JAX (literal PyTorch formula)
    scale = 6.0 / max_value
    ref = jnp.minimum(jnp.maximum(x * scale, 0.0), 6.0) / scale
    assert y.shape == x.shape and y.dtype == x.dtype
    assert jnp.allclose(y, ref, atol=1e-6), "mismatch vs reference"

    print("KERNEL_OK")
</pallas_src>

<mosaic_0001>
module attributes {stable_mosaic.version = 11 : i64} {
  func.func @_relux_kernel(%arg0: i32, %arg1: memref<1x2048xf32, #tpu.memory_space<vmem>>, %arg2: memref<1x2048xf32, #tpu.memory_space<vmem>>) attributes {dimension_semantics = [#tpu.dimension_semantics<parallel>], iteration_bounds = array<i64: 1>, scalar_prefetch = 0 : i64, scratch_operands = 0 : i64, tpu.core_type = #tpu.core_type<tc>, window_params = [{transform_indices = @transform_0, window_bounds = array<i64: 1, 2048>}, {transform_indices = @transform_1, window_bounds = array<i64: 1, 2048>}]} {
    %c0 = arith.constant 0 : index
    %c0_0 = arith.constant 0 : index
    %0 = vector.load %arg1[%c0, %c0_0] : memref<1x2048xf32, #tpu.memory_space<vmem>>, vector<1x2048xf32>
    %cst = arith.constant 0.000000e+00 : f32
    %1 = vector.broadcast %cst : f32 to vector<1x2048xf32>
    %2 = arith.maximumf %0, %1 : vector<1x2048xf32>
    %cst_1 = arith.constant 1.000000e+00 : f32
    %3 = vector.broadcast %cst_1 : f32 to vector<1x2048xf32>
    %4 = arith.minimumf %2, %3 : vector<1x2048xf32>
    %c0_2 = arith.constant 0 : index
    %c0_3 = arith.constant 0 : index
    %5 = vector.load %arg2[%c0_2, %c0_3] : memref<1x2048xf32, #tpu.memory_space<vmem>>, vector<1x2048xf32>
    tpu.vector_store %arg2[%c0_2, %c0_3], %4 {strides = array<i32>} : memref<1x2048xf32, #tpu.memory_space<vmem>>, vector<1x2048xf32>,
    return
  }
  func.func @transform_0(%arg0: i32) -> (i32, i32) {
    %c0_i32 = arith.constant 0 : i32
    %c0_i32_0 = arith.constant 0 : i32
    return %arg0, %c0_i32 : i32, i32
  }
  func.func @transform_1(%arg0: i32) -> (i32, i32) {
    %c0_i32 = arith.constant 0 : i32
    %c0_i32_0 = arith.constant 0 : i32
    return %arg0, %c0_i32 : i32, i32
  }
}

</mosaic_0001>

<llo_original>
// kernel: tpu_custom_call.1
$region0: #{tpu_custom_call.1}
  #allocation0 [shape = 'u32[]', space=smem, size = 0x4, offset = 0x4, fixed_abs, tag = 'smem constant byte address 0x4 - core index']
  #allocation1 [shape = 'u32[144,128]{1,0:T(1,128)}', space=vmem, size = 0x12000, scoped, tag = 'internal scratch']
  %s0 = inlined_call_operand.hbm [shape: f32[1,2048], index: 0, kind: input, shape index: {}]
  %s1 = inlined_call_operand.hbm [shape: f32[1,2048], index: 1, kind: output, shape index: {}]
  %s2 = sld [smem:[#allocation0]]
  $region18: #{tpu_custom_call.1} parent=0
    _
  %s4 = ssub.s32 1, %s2
  %s5 = scalar_select 0, %s4, %s2
  $region1: #{tpu_custom_call.1} parent=0
    #allocation2 [shape = 'u8[8192]{0}', space=vmem, size = 0x2000, scoped, tag = 'input window, operand 0, single buffered']
    #allocation3 [shape = 's32[1]{0}', space=sflag, size = 0x4, scoped, tag = 'scoped memory for tpu_custom_call.1']
    #allocation4 [shape = 's32[1]{0}', space=sflag, size = 0x4, scoped, tag = 'scoped memory for tpu_custom_call.1']
    #allocation5 [shape = 'u8[8192]{0}', space=vmem, size = 0x2000, scoped, tag = 'output window, operand 0, single buffered']
    %6 = vsyncpa [#allocation3], 0
    %7 = vsyncpa [#allocation4], 0
    // Predicated region
    $region2: #{tpu_custom_call.1} parent=1 // pred_check
      _
    $region3: #{tpu_custom_call.1} parent=1 // pred_check_branch
      %9 = sbr.rel (0) target = $region5
    $region4: #{tpu_custom_call.1} parent=1 // pred_region
      %s11 = ssub.s32 256, 256
      %12 = vsyncadd [#allocation3], %s11
      %s14 = sshll.u32 [#allocation2], 4
      %s15 = int_to_ptr.vmem [resolvable:$true] %s14
      %17 = dma.hbm_to_vmem [thread:$0]  %s0, 256, %s15, [#allocation3]
    $region5: #{tpu_custom_call.1} parent=1 // pred_fallthru
      _
    // Predicated region
    $region6: #{tpu_custom_call.1} parent=1 // pred_check
      _
    $region7: #{tpu_custom_call.1} parent=1 // pred_check_branch
      %19 = sbr.rel (0) target = $region9
    $region8: #{tpu_custom_call.1} parent=1 // pred_region
      %20 = dma.done [#allocation3], 256
    $region9: #{tpu_custom_call.1} parent=1 // pred_fallthru
      _
    %v21 = vld [vmem:[#allocation2] sm:$0xff]
    %v22 = vld [vmem:[#allocation2 + $0x8] sm:$0xff]
    %v23 = vmax.f32 %v21, 0.0
    %v24 = vmax.f32 %v22, 0.0
    %v25 = vmin.f32 %v23, 1.0
    %v26 = vmin.f32 %v24, 1.0
    %27 = vst [vmem:[#allocation5] sm:$0xff] %v25
    %28 = vst [vmem:[#allocation5 + $0x8] sm:$0xff] %v26
    // Predicated region
    $region10: #{tpu_custom_call.1} parent=1 // pred_check
      _
    $region11: #{tpu_custom_call.1} parent=1 // pred_check_branch
      %30 = sbr.rel (0) target = $region13
    $region12: #{tpu_custom_call.1} parent=1 // pred_region
      %s32 = ssub.s32 256, 256
      %33 = vsyncadd [#allocation4], %s32
      %s35 = sshll.u32 [#allocation5], 4
      %s36 = int_to_ptr.vmem [resolvable:$true] %s35
      %38 = dma.vmem_to_hbm [thread:$0]  %s36, 256, %s1, [#allocation4]
    $region13: #{tpu_custom_call.1} parent=1 // pred_fallthru
      _
    // Predicated region
    $region14: #{tpu_custom_call.1} parent=1 // pred_check
      _
    $region15: #{tpu_custom_call.1} parent=1 // pred_check_branch
      %40 = sbr.rel (0) target = $region17
    $region16: #{tpu_custom_call.1} parent=1 // pred_region
      %41 = dma.done [#allocation4], 256
    $region17: #{tpu_custom_call.1} parent=1 // pred_fallthru
      _
    %42 = vsyncpa [#allocation3], 1
    %43 = vsyncpa [#allocation4], 1

</llo_original>
